<compile_context>
chip_gen: v7x
topology: tpu7x:2x2x1
jax: 0.10.0
libtpu: 0.0.40
codegen_flags: <defaults>
</compile_context>

<pallas_src>
import functools

import jax
import jax.numpy as jnp
from jax.experimental import pallas as pl
from jax.experimental.pallas import tpu as pltpu


DEFAULT_EPS = 1e-5
DEFAULT_MOMENTUM_SAMPLES = 10000
_LANE = 128


def _data_norm_kernel(x_ref, ss_ref, o_ref, *, compute_dtype):
    # ss_ref packs per-row (scale, shift) in f32: out = x * scale + shift.
    scale = ss_ref[:, 0:1].astype(compute_dtype)   # (BR, 1), broadcast over lanes
    shift = ss_ref[:, 1:2].astype(compute_dtype)   # (BR, 1)
    x = x_ref[...].astype(compute_dtype)           # (BR, BC)
    o_ref[...] = (x * scale + shift).astype(o_ref.dtype)


def _sublane_multiple(dtype):
    # f32 -> 8, bf16 -> 16, int8/fp8 -> 32 (native sublane packing).
    return {4: 8, 2: 16, 1: 32}.get(jnp.dtype(dtype).itemsize, 8)


def _tpu_generation():
    """Best-effort chip-generation detection; safe fallback to 'unknown'."""
    try:
        kind = jax.devices()[0].device_kind.lower()
    except Exception:
        return "unknown"
    if "v5" in kind:
        return "v5"
    if "v6" in kind:
        return "v6"
    if "7" in kind:          # "TPU7x" / "TPU v7x"
        return "v7"
    return "unknown"


def data_norm_normalize(x, running_mean, running_var, *, eps=DEFAULT_EPS):
    """Pallas forward: (x - running_mean) / sqrt(running_var + eps), channel dim 1."""
    if x.ndim < 2:
        raise ValueError("DataNorm expects an (N, C, ...) input")
    orig_shape = x.shape
    orig_dtype = x.dtype
    N, C = x.shape[0], x.shape[1]
    S = 1
    for d in x.shape[2:]:
        S *= d
    rows = N * C

    # Lane-dense slab view — pure reshape, no padding copy, no extra HBM traffic.
    x2d = jnp.reshape(x, (rows, S))

    # Hoist the per-row math out of the kernel (C tiny values, done once):
    # scale = rsqrt(var + eps), shift = -mean * scale  =>  out = x*scale + shift.
    mean_c = jnp.reshape(running_mean, (C,)).astype(jnp.float32)
    var_c = jnp.reshape(running_var, (C,)).astype(jnp.float32)
    inv_std_c = 1.0 / jnp.sqrt(var_c + jnp.float32(eps))
    shift_c = -mean_c * inv_std_c
    ss_rows = jnp.tile(jnp.stack([inv_std_c, shift_c], axis=-1), (N, 1))  # (rows, 2)

    gen = _tpu_generation()
    is_v7 = gen == "v7"
    itemsize = jnp.dtype(orig_dtype).itemsize
    sub = _sublane_multiple(orig_dtype)

    # bf16 bulk math stays in bf16 on v6e/v7x (native bf16 VPU); f32 elsewhere.
    if orig_dtype == jnp.bfloat16 and gen in ("v6", "v7"):
        compute_dtype = jnp.bfloat16
    else:
        compute_dtype = jnp.float32

    # Per-generation block budget: bigger blocks on v7x keep the fixed per-step
    # overhead negligible at its higher HBM bandwidth; footprint (in + out,
    # double-buffered) = 4 * target_bytes, safely under each chip's VMEM.
    if is_v7:
        target_bytes = 6 * 1024 * 1024
        vmem_limit = 40 * 1024 * 1024     # 64 MiB physical on v7x
    else:
        target_bytes = 4 * 1024 * 1024
        vmem_limit = 32 * 1024 * 1024     # 128 MiB physical on v5e/v6e

    # Column tile: lane-dense (multiple of 128) and bounded by the byte budget.
    budget_cols = max(_LANE, ((target_bytes // (sub * itemsize)) // _LANE) * _LANE)
    if S < _LANE:
        bc = S                                            # full last dim (== array extent)
    elif S % _LANE == 0 and S * itemsize * sub <= target_bytes:
        bc = S                                            # full rows: contiguous block DMAs
    else:
        bc = min(budget_cols, pl.cdiv(S, _LANE) * _LANE)  # ragged edge tile is masked

    # Row tile: fill the byte budget; round to the sublane multiple.
    br = max(sub, ((target_bytes // max(1, bc * itemsize)) // sub) * sub)
    if br >= rows:
        br = rows

    # v7x has 2 TensorCores: ensure a "parallel" axis has >= 2 steps when possible
    # so both cores stream HBM. Skipped on single-core generations (pure overhead there).
    if is_v7 and pl.cdiv(rows, br) * pl.cdiv(S, bc) < 2:
        if rows > sub:
            br = max(sub, ((rows // 2) // sub) * sub)
        elif bc > _LANE:
            bc = max(_LANE, ((bc // 2) // _LANE) * _LANE)

    grid = (pl.cdiv(rows, br), pl.cdiv(S, bc))

    n = x.size
    cost = pl.CostEstimate(
        flops=2 * n,                                   # mul + add per element
        transcendentals=0,                             # rsqrt hoisted to the wrapper
        bytes_accessed=2 * n * itemsize + rows * 2 * 4,
    )

    out2d = pl.pallas_call(
        functools.partial(_data_norm_kernel, compute_dtype=compute_dtype),
        out_shape=jax.ShapeDtypeStruct((rows, S), orig_dtype),
        grid=grid,
        in_specs=[
            pl.BlockSpec((br, bc), lambda i, j: (i, j)),
            pl.BlockSpec((br, 2), lambda i, j: (i, 0)),
        ],
        out_specs=pl.BlockSpec((br, bc), lambda i, j: (i, j)),
        compiler_params=pltpu.CompilerParams(
            dimension_semantics=("parallel", "parallel"),
            vmem_limit_bytes=vmem_limit,
        ),
        cost_estimate=cost,
    )(x2d, ss_rows)

    return jnp.reshape(out2d, orig_shape)


# TODO(synk): the training-mode running_count/mean/var update is stateful buffer
# bookkeeping (tiny per-channel reduction + scalar count); mirrored in plain JAX
# rather than as a Pallas kernel — the Pallas work is the normalization itself.
def data_norm_update_stats(batch_in, running_count, running_mean, running_var,
                           *, momentum_samples=DEFAULT_MOMENTUM_SAMPLES):
    reduce_dims = tuple(i for i in range(batch_in.ndim) if i != 1)
    sample_count = batch_in.shape[0]
    old_count = min(int(running_count), momentum_samples)
    new_count = old_count + sample_count
    ratio = sample_count / new_count
    mean_tmp = jnp.mean(batch_in, axis=reduce_dims, keepdims=True)
    var_tmp = jnp.var(batch_in, axis=reduce_dims, keepdims=True)   # unbiased=False
    delta_mean = mean_tmp - running_mean
    delta_var = var_tmp - running_var
    new_mean = running_mean + ratio * delta_mean
    new_var = (running_var + ratio * delta_var
               + (ratio * (1.0 - ratio)) * delta_mean * delta_mean)
    return min(new_count, momentum_samples), new_mean, new_var


def data_norm_forward(x, running_count, running_mean, running_var, *,
                      momentum_samples=DEFAULT_MOMENTUM_SAMPLES,
                      eps=DEFAULT_EPS, training=False):
    """Functional DataNorm.forward (the PyTorch `inplace` flag is moot in JAX)."""
    if training:
        running_count, running_mean, running_var = data_norm_update_stats(
            x, running_count, running_mean, running_var,
            momentum_samples=momentum_samples)
    out = data_norm_normalize(x, running_mean, running_var, eps=eps)
    return out, running_count, running_mean, running_var


if __name__ == "__main__":
    key = jax.random.PRNGKey(0)
    k1, k2 = jax.random.split(key)

    # DataNorm(expected_input_dim=4, num_channels=4) on NCHW input.
    N, C, H, W = 2, 4, 16, 16
    x_train = jax.random.normal(k1, (N, C, H, W), dtype=jnp.float32) * 2.0 + 0.5
    x_eval = jax.random.normal(k2, (N, C, H, W), dtype=jnp.float32)

    running_count = 0
    running_mean = jnp.zeros((1, C, 1, 1), dtype=jnp.float32)
    running_var = jnp.ones((1, C, 1, 1), dtype=jnp.float32)

    # --- training step: update running stats, then normalize with them ---
    y_tr, running_count, running_mean, running_var = data_norm_forward(
        x_train, running_count, running_mean, running_var, training=True)
    y_tr = jax.block_until_ready(y_tr)

    # plain-JAX reference mirroring the PyTorch module's training branch
    axes = (0, 2, 3)
    m_b = jnp.mean(x_train, axis=axes, keepdims=True)
    v_b = jnp.var(x_train, axis=axes, keepdims=True)
    ratio = N / (0 + N)   # old_count = 0
    ref_mean = 0.0 + ratio * (m_b - 0.0)
    ref_var = 1.0 + ratio * (v_b - 1.0) + ratio * (1.0 - ratio) * (m_b - 0.0) ** 2
    y_tr_ref = (x_train - ref_mean) / jnp.sqrt(ref_var + DEFAULT_EPS)
    assert y_tr.shape == x_train.shape and y_tr.dtype == x_train.dtype
    assert jnp.allclose(y_tr, y_tr_ref, atol=1e-5, rtol=1e-5), "training-mode mismatch"

    # --- eval step with the now non-trivial running stats ---
    y_ev, *_ = data_norm_forward(
        x_eval, running_count, running_mean, running_var, training=False)
    y_ev = jax.block_until_ready(y_ev)
    y_ev_ref = (x_eval - running_mean) / jnp.sqrt(running_var + DEFAULT_EPS)
    assert y_ev.shape == x_eval.shape and y_ev.dtype == x_eval.dtype
    assert jnp.allclose(y_ev, y_ev_ref, atol=1e-5, rtol=1e-5), "eval-mode mismatch"

    print("KERNEL_OK")
</pallas_src>

<mosaic_0001>
module attributes {stable_mosaic.version = 11 : i64} {
  func.func @_data_norm_kernel(%arg0: i32, %arg1: i32, %arg2: memref<8x256xf32, #tpu.memory_space<vmem>>, %arg3: memref<8x2xf32, #tpu.memory_space<vmem>>, %arg4: memref<8x256xf32, #tpu.memory_space<vmem>>) attributes {dimension_semantics = [#tpu.dimension_semantics<parallel>, #tpu.dimension_semantics<parallel>], iteration_bounds = array<i64: 1, 1>, scalar_prefetch = 0 : i64, scratch_operands = 0 : i64, tpu.core_type = #tpu.core_type<tc>, window_params = [{transform_indices = @transform_0, window_bounds = array<i64: 8, 256>}, {transform_indices = @transform_1, window_bounds = array<i64: 8, 2>}, {transform_indices = @transform_2, window_bounds = array<i64: 8, 256>}]} {
    %c0 = arith.constant 0 : index
    %c0_0 = arith.constant 0 : index
    %0 = vector.load %arg3[%c0, %c0_0] : memref<8x2xf32, #tpu.memory_space<vmem>>, vector<8x1xf32>
    %c0_1 = arith.constant 0 : index
    %c1 = arith.constant 1 : index
    %1 = vector.load %arg3[%c0_1, %c1] : memref<8x2xf32, #tpu.memory_space<vmem>>, vector<8x1xf32>
    %c0_2 = arith.constant 0 : index
    %c0_3 = arith.constant 0 : index
    %2 = vector.load %arg2[%c0_2, %c0_3] : memref<8x256xf32, #tpu.memory_space<vmem>>, vector<8x256xf32>
    %3 = vector.broadcast %0 : vector<8x1xf32> to vector<8x256xf32>
    %4 = arith.mulf %2, %3 : vector<8x256xf32>
    %5 = vector.broadcast %1 : vector<8x1xf32> to vector<8x256xf32>
    %6 = arith.addf %4, %5 : vector<8x256xf32>
    %c0_4 = arith.constant 0 : index
    %c0_5 = arith.constant 0 : index
    %7 = vector.load %arg4[%c0_4, %c0_5] : memref<8x256xf32, #tpu.memory_space<vmem>>, vector<8x256xf32>
    tpu.vector_store %arg4[%c0_4, %c0_5], %6 {strides = array<i32>} : memref<8x256xf32, #tpu.memory_space<vmem>>, vector<8x256xf32>,
    return
  }
  func.func @transform_0(%arg0: i32, %arg1: i32) -> (i32, i32) {
    %c0_i32 = arith.constant 0 : i32
    return %arg0, %arg1 : i32, i32
  }
  func.func @transform_1(%arg0: i32, %arg1: i32) -> (i32, i32) {
    %c0_i32 = arith.constant 0 : i32
    %c0_i32_0 = arith.constant 0 : i32
    return %arg0, %c0_i32 : i32, i32
  }
  func.func @transform_2(%arg0: i32, %arg1: i32) -> (i32, i32) {
    %c0_i32 = arith.constant 0 : i32
    return %arg0, %arg1 : i32, i32
  }
}

</mosaic_0001>

<llo_original>
// kernel: tpu_custom_call.1
$region0: #{tpu_custom_call.1}
  #allocation0 [shape = 'u32[]', space=smem, size = 0x4, offset = 0x4, fixed_abs, tag = 'smem constant byte address 0x4 - core index']
  #allocation1 [shape = 'u32[144,128]{1,0:T(1,128)}', space=vmem, size = 0x12000, scoped, tag = 'internal scratch']
  %s0 = inlined_call_operand.hbm [shape: f32[8,256], index: 0, kind: input, shape index: {}]
  %s1 = inlined_call_operand.vmem [shape: f32[8,2], index: 1, kind: input, shape index: {}]
  %s2 = inlined_call_operand.hbm [shape: f32[8,256], index: 2, kind: output, shape index: {}]
  %s3 = sld [smem:[#allocation0]]
  $region22: #{tpu_custom_call.1} parent=0
    _
  %s5 = ssub.s32 1, %s3
  %s6 = scalar_select 0, %s5, %s3
  $region1: #{tpu_custom_call.1} parent=0
    #allocation2 [shape = 'u8[8192]{0}', space=vmem, size = 0x2000, scoped, tag = 'input window, operand 0, single buffered']
    #allocation3 [shape = 's32[1]{0}', space=sflag, size = 0x4, scoped, tag = 'scoped memory for tpu_custom_call.1']
    #allocation4 [shape = 's32[1]{0}', space=sflag, size = 0x4, scoped, tag = 'scoped memory for tpu_custom_call.1']
    #allocation5 [shape = 'u8[8192]{0}', space=vmem, size = 0x2000, scoped, tag = 'output window, operand 0, single buffered']
    %7 = vsyncpa [#allocation3], 0
    %8 = vsyncpa [#allocation4], 0
    // Predicated region
    $region2: #{tpu_custom_call.1} parent=1 // pred_check
      _
    $region3: #{tpu_custom_call.1} parent=1 // pred_check_branch
      %10 = sbr.rel (0) target = $region5
    $region4: #{tpu_custom_call.1} parent=1 // pred_region
      %s12 = ssub.s32 256, 256
      %13 = vsyncadd [#allocation3], %s12
      %s15 = sshll.u32 [#allocation2], 4
      %s16 = int_to_ptr.vmem [resolvable:$true] %s15
      %18 = dma.hbm_to_vmem [thread:$0]  %s0, 256, %s16, [#allocation3]
    $region5: #{tpu_custom_call.1} parent=1 // pred_fallthru
      _
    // Predicated region
    $region6: #{tpu_custom_call.1} parent=1 // pred_check
      _
    $region7: #{tpu_custom_call.1} parent=1 // pred_check_branch
      %20 = sbr.rel (0) target = $region9
    $region8: #{tpu_custom_call.1} parent=1 // pred_region
      _
    $region9: #{tpu_custom_call.1} parent=1 // pred_fallthru
      _
    // Predicated region
    $region10: #{tpu_custom_call.1} parent=1 // pred_check
      _
    $region11: #{tpu_custom_call.1} parent=1 // pred_check_branch
      %22 = sbr.rel (0) target = $region13
    $region12: #{tpu_custom_call.1} parent=1 // pred_region
      %23 = dma.done [#allocation3], 256
    $region13: #{tpu_custom_call.1} parent=1 // pred_fallthru
      _
    %v24 = vld [vmem:[%s1] sm:$0xff]
    %v25 = vld [vmem:[#allocation2] sm:$0xff]
    %v26 = vld [vmem:[#allocation2 + $0x8] sm:$0xff]
    %28 = vset.pattern.permute.xlu0 0
    %29 = vperm.xlu0 %28, %v24
    %v30 = vpop.permute.xlu0 %29
    %v32 = vmul.f32 %v25, %v30
    %v33 = vmul.f32 %v26, %v30
    %34 = vset.pattern.permute.xlu0 1
    %35 = vperm.xlu0 %34, %v24
    %v36 = vpop.permute.xlu0 %35
    %v38 = vadd.f32 %v32, %v36
    %v39 = vadd.f32 %v33, %v36
    %40 = vst [vmem:[#allocation5] sm:$0xff] %v38
    %41 = vst [vmem:[#allocation5 + $0x8] sm:$0xff] %v39
    // Predicated region
    $region14: #{tpu_custom_call.1} parent=1 // pred_check
      _
    $region15: #{tpu_custom_call.1} parent=1 // pred_check_branch
      %43 = sbr.rel (0) target = $region17
    $region16: #{tpu_custom_call.1} parent=1 // pred_region
      %s45 = ssub.s32 256, 256
      %46 = vsyncadd [#allocation4], %s45
      %s48 = sshll.u32 [#allocation5], 4
      %s49 = int_to_ptr.vmem [resolvable:$true] %s48
      %51 = dma.vmem_to_hbm [thread:$0]  %s49, 256, %s2, [#allocation4]
    $region17: #{tpu_custom_call.1} parent=1 // pred_fallthru
      _
    // Predicated region
    $region18: #{tpu_custom_call.1} parent=1 // pred_check
      _
    $region19: #{tpu_custom_call.1} parent=1 // pred_check_branch
      %53 = sbr.rel (0) target = $region21
    $region20: #{tpu_custom_call.1} parent=1 // pred_region
      %54 = dma.done [#allocation4], 256
    $region21: #{tpu_custom_call.1} parent=1 // pred_fallthru
      _
    %55 = vsyncpa [#allocation3], 1
    %56 = vsyncpa [#allocation4], 1

</llo_original>
